<compile_context>
chip_gen: v7x
topology: tpu7x:2x2x1
jax: 0.10.0
libtpu: 0.0.40
codegen_flags: <defaults>
</compile_context>

<pallas_src>
import functools

import jax
import jax.numpy as jnp
from jax.experimental import pallas as pl
from jax.experimental.pallas import tpu as pltpu

C_IN = 3          # DiffusionNet C_in
C_WIDTH = 128     # DiffusionNet C_width
K_OUT = 30        # DiffusionNetBasis default k
N_BLOCK = 12      # DiffusionNetBasis default n_block


@functools.lru_cache(maxsize=None)
def _vmem_limit():
    """Generation-aware scoped-VMEM budget: half of physical, clamped to the
    v7x-safe 32..64 MiB range. Post spectral restructure the per-step footprint
    is only a few MiB, so this is headroom, not a requirement."""
    cap = 64 * 1024 * 1024
    try:
        cap = int(getattr(pltpu.get_tpu_info(), "vmem_capacity_bytes", cap))
    except Exception:
        pass
    return max(32 * 1024 * 1024, min(cap // 2, 64 * 1024 * 1024))


def _choose_tm_grad(n):
    """Row tile for the one-time grad@evecs setup: keep the bf16 (tm, N) grad
    tiles <= ~2 MiB each so double-buffering both operators stays small."""
    for tm in (512, 256, 128, 64, 32, 16, 8):
        if n % tm == 0 and tm * n <= (1 << 20):
            return tm
    return n  # full-extent fallback (always BlockSpec-legal)


def _choose_tm_block(n):
    """Row tile for the block kernel: tiles are only (tm, 128), so take the
    largest aligned divisor to amortize the ~0.35 us per-grid-step overhead."""
    for tm in (1024, 512, 256, 128, 64, 32, 16, 8):
        if n % tm == 0:
            return tm
    # TODO(synk): no masking path for N not a multiple of 8; fall back to a
    # full-extent block (correct, possibly masked partial stores).
    return n


def _compiler_params(semantics):
    return pltpu.CompilerParams(dimension_semantics=semantics,
                                vmem_limit_bytes=_vmem_limit())


# --------------------------------------------------------------------------
# One-time setup kernel: project the dense gradient operators into the
# spectral basis.  gxe = gradX @ evecs, gye = gradY @ evecs  (B, N, Kp), bf16.
# The O(N^2) operators are read from HBM exactly once for the whole forward.
# --------------------------------------------------------------------------
def _grad_basis_kernel(gx_ref, gy_ref, ev_ref, gxe_ref, gye_ref):
    ev = ev_ref[...]                                                         # (N, Kp) bf16
    gxe_ref[...] = jnp.dot(gx_ref[...], ev,
                           preferred_element_type=jnp.float32).astype(gxe_ref.dtype)
    gye_ref[...] = jnp.dot(gy_ref[...], ev,
                           preferred_element_type=jnp.float32).astype(gye_ref.dtype)


def grad_to_basis(gradx_bf, grady_bf, evecs_bf):
    B, N, _ = gradx_bf.shape
    Kp = evecs_bf.shape[-1]
    tm = _choose_tm_grad(N)
    out_sd = jax.ShapeDtypeStruct((B, N, Kp), jnp.bfloat16)
    return pl.pallas_call(
        _grad_basis_kernel,
        out_shape=(out_sd, out_sd),
        grid=(B, N // tm),
        in_specs=[
            pl.BlockSpec((None, tm, N), lambda b, j: (b, j, 0)),   # gradX tile (bf16)
            pl.BlockSpec((None, tm, N), lambda b, j: (b, j, 0)),   # gradY tile (bf16)
            pl.BlockSpec((None, N, Kp), lambda b, j: (b, 0, 0)),   # evecs (bf16, resident)
        ],
        out_specs=[
            pl.BlockSpec((None, tm, Kp), lambda b, j: (b, j, 0)),
            pl.BlockSpec((None, tm, Kp), lambda b, j: (b, j, 0)),
        ],
        compiler_params=_compiler_params(("parallel", "parallel")),
    )(gradx_bf, grady_bf, evecs_bf)


# --------------------------------------------------------------------------
# Per-block kernel 1: spectral projection (LearnedTimeDiffusion, 'spectral').
#   diff = exp(-evals * t) * (evecs^T @ (mass * h))          -> (Kp, C) bf16
# mass*h is pre-multiplied in the wrapper (no lane-width-1 mass block).
# --------------------------------------------------------------------------
def _spectral_kernel(mh_ref, evecs_t_ref, evals_ref, t_ref, diff_ref):
    spec = jnp.dot(evecs_t_ref[...], mh_ref[...],
                   preferred_element_type=jnp.float32)                       # (Kp, C)
    coef = jnp.exp(-evals_ref[...] * t_ref[...])                             # (Kp,1)*(1,C)
    diff_ref[...] = (coef * spec).astype(diff_ref.dtype)


def spectral_diffuse(mh_bf, evecs_t_bf, evals_pad, t):
    B, N, C = mh_bf.shape
    Kp = evecs_t_bf.shape[1]
    return pl.pallas_call(
        _spectral_kernel,
        out_shape=jax.ShapeDtypeStruct((B, Kp, C), jnp.bfloat16),
        grid=(B,),
        in_specs=[
            pl.BlockSpec((None, N, C), lambda b: (b, 0, 0)),     # mass*h (bf16)
            pl.BlockSpec((None, Kp, N), lambda b: (b, 0, 0)),    # evecs^T (bf16)
            pl.BlockSpec((None, Kp, 1), lambda b: (b, 0, 0)),    # evals (padded)
            pl.BlockSpec((1, C), lambda b: (0, 0)),              # diffusion time
        ],
        out_specs=pl.BlockSpec((None, Kp, C), lambda b: (b, 0, 0)),
        compiler_params=_compiler_params(("parallel",)),
    )(mh_bf, evecs_t_bf, evals_pad, t)


# --------------------------------------------------------------------------
# Per-block kernel 2: fused block tail, row-tiled over vertices.
#   xd = evecs_tile @ diff                       (spectral expansion)
#   gX = (gradX@evecs)_tile @ diff ; gY = (gradY@evecs)_tile @ diff
#   [gX; gY] @ [A_re^T | A_im^T]  -> real/imag   (single stacked rotation dot)
#   xg = tanh(gX * real + gY * imag)
#   y  = relu(h@W0a + xd@W0b + xg@W0c + b0); y = relu(y@W1+b1); y = y@W2+b2
#   h_new = y + h                                (fused residual)
# All MXU operands bf16, f32 accumulation; elementwise tail in f32.
# --------------------------------------------------------------------------
def _block_kernel(h_ref, ev_ref, gxe_ref, gye_ref, diff_ref,
                  a_ref, w0a_ref, w0b_ref, w0c_ref, b0_ref,
                  w1_ref, b1_ref, w2_ref, b2_ref, o_ref):
    h = h_ref[...]                                                           # (tm, C) f32
    diff = diff_ref[...]                                                     # (Kp, C) bf16

    xd = jnp.dot(ev_ref[...], diff, preferred_element_type=jnp.float32)      # (tm, C)
    gX = jnp.dot(gxe_ref[...], diff, preferred_element_type=jnp.float32)     # (tm, C)
    gY = jnp.dot(gye_ref[...], diff, preferred_element_type=jnp.float32)     # (tm, C)

    tm, c = gX.shape
    gxy = jnp.concatenate([gX, gY], axis=0).astype(jnp.bfloat16)             # (2tm, C)
    rot = jnp.dot(gxy, a_ref[...], preferred_element_type=jnp.float32)       # (2tm, 2C)
    gXA = rot[:tm]
    gYA = rot[tm:]
    real = gXA[:, :c] - gYA[:, c:]       # A_re(gX) - A_im(gY)
    imag = gYA[:, :c] + gXA[:, c:]       # A_re(gY) + A_im(gX)
    xg = jnp.tanh(gX * real + gY * imag)                                     # (tm, C) f32

    # MiniMLP([3C, C, C, C]) with pre-split w0 (no (tm, 3C) concat).
    # TODO(synk): MiniMLP's Dropout(p=0.5) is train-time only; eval-mode identity here.
    y = (jnp.dot(h.astype(jnp.bfloat16), w0a_ref[...],
                 preferred_element_type=jnp.float32)
         + jnp.dot(xd.astype(jnp.bfloat16), w0b_ref[...],
                   preferred_element_type=jnp.float32)
         + jnp.dot(xg.astype(jnp.bfloat16), w0c_ref[...],
                   preferred_element_type=jnp.float32)
         + b0_ref[...])
    y = jnp.maximum(y, 0.0)
    y = jnp.dot(y.astype(jnp.bfloat16), w1_ref[...],
                preferred_element_type=jnp.float32) + b1_ref[...]
    y = jnp.maximum(y, 0.0)
    y = jnp.dot(y.astype(jnp.bfloat16), w2_ref[...],
                preferred_element_type=jnp.float32) + b2_ref[...]

    o_ref[...] = (y + h).astype(o_ref.dtype)                                 # residual


def diffusion_block(h, evecs_bf, gxe_bf, gye_bf, diff_bf, blk):
    B, N, C = h.shape
    Kp = evecs_bf.shape[-1]
    tm = _choose_tm_block(N)
    return pl.pallas_call(
        _block_kernel,
        out_shape=jax.ShapeDtypeStruct((B, N, C), h.dtype),
        grid=(B, N // tm),
        in_specs=[
            pl.BlockSpec((None, tm, C), lambda b, j: (b, j, 0)),    # h tile (f32)
            pl.BlockSpec((None, tm, Kp), lambda b, j: (b, j, 0)),   # evecs tile (bf16)
            pl.BlockSpec((None, tm, Kp), lambda b, j: (b, j, 0)),   # gradX@evecs tile
            pl.BlockSpec((None, tm, Kp), lambda b, j: (b, j, 0)),   # gradY@evecs tile
            pl.BlockSpec((None, Kp, C), lambda b, j: (b, 0, 0)),    # diff (bf16, resident)
            pl.BlockSpec((C, 2 * C), lambda b, j: (0, 0)),          # [A_re^T | A_im^T] bf16
            pl.BlockSpec((C, C), lambda b, j: (0, 0)),              # w0a bf16
            pl.BlockSpec((C, C), lambda b, j: (0, 0)),              # w0b bf16
            pl.BlockSpec((C, C), lambda b, j: (0, 0)),              # w0c bf16
            pl.BlockSpec((1, C), lambda b, j: (0, 0)),              # b0  f32
            pl.BlockSpec((C, C), lambda b, j: (0, 0)),              # w1  bf16
            pl.BlockSpec((1, C), lambda b, j: (0, 0)),              # b1  f32
            pl.BlockSpec((C, C), lambda b, j: (0, 0)),              # w2  bf16
            pl.BlockSpec((1, C), lambda b, j: (0, 0)),              # b2  f32
        ],
        out_specs=pl.BlockSpec((None, tm, C), lambda b, j: (b, j, 0)),
        compiler_params=_compiler_params(("parallel", "parallel")),
    )(h, evecs_bf, gxe_bf, gye_bf, diff_bf,
      blk["a_cat"], blk["w0a"], blk["w0b"], blk["w0c"], blk["b0"],
      blk["w1"], blk["b1"], blk["w2"], blk["b2"])


# --------------------------------------------------------------------------
# Last linear (C_width -> k), output padded to a lane-dense 128-wide slab and
# sliced back to k in the wrapper.
# --------------------------------------------------------------------------
def _last_linear_kernel(x_ref, w_ref, b_ref, o_ref):
    y = jnp.dot(x_ref[...].astype(jnp.bfloat16), w_ref[...],
                preferred_element_type=jnp.float32) + b_ref[...]
    o_ref[...] = y.astype(o_ref.dtype)


def last_linear(h, w_bf, b):
    B, N, C = h.shape
    Cout = w_bf.shape[1]
    tm = _choose_tm_block(N)
    return pl.pallas_call(
        _last_linear_kernel,
        out_shape=jax.ShapeDtypeStruct((B, N, Cout), h.dtype),
        grid=(B, N // tm),
        in_specs=[
            pl.BlockSpec((None, tm, C), lambda b, j: (b, j, 0)),
            pl.BlockSpec((C, Cout), lambda b, j: (0, 0)),
            pl.BlockSpec((1, Cout), lambda b, j: (0, 0)),
        ],
        out_specs=pl.BlockSpec((None, tm, Cout), lambda b, j: (b, j, 0)),
        compiler_params=_compiler_params(("parallel", "parallel")),
    )(h, w_bf, b.reshape(1, Cout))


# --------------------------------------------------------------------------
# Deterministic parameter init (mirrors nn.Linear default init).  Weights are
# stored transposed (fan_in, fan_out) so kernels do x @ W directly; MXU
# weights are pre-cast to bf16; w0 is pre-split into its h / x_diffuse /
# x_grad slices and [A_re | A_im] is pre-concatenated.
# --------------------------------------------------------------------------
def _torch_linear_init(key, fan_in, fan_out):
    kw, kb = jax.random.split(key)
    bound = 1.0 / jnp.sqrt(jnp.float32(fan_in))
    w_t = jax.random.uniform(kw, (fan_in, fan_out), jnp.float32, -bound, bound)
    b = jax.random.uniform(kb, (fan_out,), jnp.float32, -bound, bound)
    return w_t, b


def init_params(key, k=K_OUT, n_block=N_BLOCK, c_width=C_WIDTH, c_in=C_IN):
    keys = jax.random.split(key, 2 + n_block)
    first_w, first_b = _torch_linear_init(keys[0], c_in, c_width)
    last_w, last_b = _torch_linear_init(keys[1], c_width, k)
    last_w_pad = jnp.zeros((c_width, 128), jnp.float32).at[:, :k].set(last_w)
    last_b_pad = jnp.zeros((128,), jnp.float32).at[:k].set(last_b)

    bf = jnp.bfloat16
    blocks = []
    mlp_c = 3 * c_width  # cat(x_in, x_diffuse, x_grad_features)
    for i in range(n_block):
        bk = jax.random.split(keys[2 + i], 6)
        # torch inits diffusion_time to 0.0 and clamps to >=1e-8 in forward;
        # use a small deterministic positive perturbation so exp() is non-trivial.
        t = 1e-8 + jax.random.uniform(bk[0], (c_width,), jnp.float32, 0.0, 0.1)
        a_re, _ = _torch_linear_init(bk[1], c_width, c_width)  # bias=False
        a_im, _ = _torch_linear_init(bk[2], c_width, c_width)  # bias=False
        w0, b0 = _torch_linear_init(bk[3], mlp_c, c_width)
        w1, b1 = _torch_linear_init(bk[4], c_width, c_width)
        w2, b2 = _torch_linear_init(bk[5], c_width, c_width)
        blocks.append(dict(
            t=t,
            a_cat=jnp.concatenate([a_re, a_im], axis=1).astype(bf),   # (C, 2C)
            w0a=w0[:c_width].astype(bf),
            w0b=w0[c_width:2 * c_width].astype(bf),
            w0c=w0[2 * c_width:].astype(bf),
            b0=b0.reshape(1, c_width),
            w1=w1.astype(bf), b1=b1.reshape(1, c_width),
            w2=w2.astype(bf), b2=b2.reshape(1, c_width)))
    return dict(first_w=first_w, first_b=first_b,
                last_w=last_w_pad.astype(bf), last_b=last_b_pad, blocks=blocks)


# --------------------------------------------------------------------------
# Full forward (= DiffusionNetBasis.forward)
# --------------------------------------------------------------------------
def diffusionnet_basis_forward(params, x, mass, lap, evals, evecs, gradx, grady):
    # lap is unused on the spectral diffusion path, exactly as in the reference
    # (LearnedTimeDiffusion with method='spectral' ignores L).
    del lap
    B, N, _ = x.shape
    K = evecs.shape[-1]
    Kp = max(128, ((K + 127) // 128) * 128)   # lane-dense padded basis width

    # ---- one-time layout / dtype plumbing ---------------------------------
    # zero-pad the spectral basis (exact: padded columns / eigenvalues
    # contribute nothing to any product below).
    evecs_pad = jnp.pad(evecs, ((0, 0), (0, 0), (0, Kp - K)))
    evals_pad = jnp.pad(evals, ((0, 0), (0, Kp - K))).reshape(B, Kp, 1)
    evecs_bf = evecs_pad.astype(jnp.bfloat16)
    evecs_t_bf = jnp.swapaxes(evecs_pad, 1, 2).astype(jnp.bfloat16)
    mass_col = mass[..., None]                                   # (B, N, 1) f32

    # spectral re-association: gradX @ (evecs @ diff) == (gradX @ evecs) @ diff.
    # The dense O(N^2) grad operators are read from HBM exactly once here.
    gxe_bf, gye_bf = grad_to_basis(gradx.astype(jnp.bfloat16),
                                   grady.astype(jnp.bfloat16), evecs_bf)

    # first linear (C_in=3): left to plain XLA — as a kernel it is pure
    # launch / masked-DMA overhead (per review).
    h = jnp.einsum('bnc,cd->bnd', x, params["first_w"]) + params["first_b"]

    for blk in params["blocks"]:
        t = jnp.maximum(blk["t"], 1e-8).reshape(1, C_WIDTH)      # clamp as in torch
        mh = (h * mass_col).astype(jnp.bfloat16)                 # mass fold (wrapper)
        diff = spectral_diffuse(mh, evecs_t_bf, evals_pad, t)    # (B, Kp, C) bf16
        h = diffusion_block(h, evecs_bf, gxe_bf, gye_bf, diff, blk)

    out = last_linear(h, params["last_w"], params["last_b"])[..., :K_OUT]
    return out.reshape(B, N, K_OUT)                              # x.view(B, n_pts, k)


if __name__ == "__main__":
    key = jax.random.PRNGKey(0)
    B, N, K_EIG = 2, 64, 16

    kp, kx, km, kl, kev, kvc, kgx, kgy = jax.random.split(key, 8)
    params = init_params(kp)

    x = jax.random.normal(kx, (B, N, C_IN), jnp.float32)
    mass = jax.random.uniform(km, (B, N), jnp.float32, 0.5, 1.5)
    lap = jax.random.normal(kl, (B, N, N), jnp.float32)          # unused (spectral path)
    evals = jax.random.uniform(kev, (B, K_EIG), jnp.float32, 0.0, 10.0)
    evecs = jax.random.normal(kvc, (B, N, K_EIG), jnp.float32)
    gradx = jax.random.normal(kgx, (B, N, N), jnp.float32) * 0.1
    grady = jax.random.normal(kgy, (B, N, N), jnp.float32) * 0.1

    out = diffusionnet_basis_forward(params, x, mass, lap, evals, evecs, gradx, grady)
    out = jax.block_until_ready(out)
    assert out.shape == (B, N, K_OUT) and out.dtype == jnp.float32
    assert bool(jnp.all(jnp.isfinite(out)))
    print("KERNEL_OK")
</pallas_src>

<mosaic_0001>
module attributes {stable_mosaic.version = 11 : i64} {
  func.func @_grad_basis_kernel(%arg0: i32, %arg1: i32, %arg2: memref<1x64x64xbf16, #tpu.memory_space<vmem>>, %arg3: memref<1x64x64xbf16, #tpu.memory_space<vmem>>, %arg4: memref<1x64x128xbf16, #tpu.memory_space<vmem>>, %arg5: memref<1x64x128xbf16, #tpu.memory_space<vmem>>, %arg6: memref<1x64x128xbf16, #tpu.memory_space<vmem>>) attributes {dimension_semantics = [#tpu.dimension_semantics<parallel>, #tpu.dimension_semantics<parallel>], iteration_bounds = array<i64: 2, 1>, scalar_prefetch = 0 : i64, scratch_operands = 0 : i64, tpu.core_type = #tpu.core_type<tc>, window_params = [{transform_indices = @transform_0, window_bounds = array<i64: 1, 64, 64>}, {transform_indices = @transform_1, window_bounds = array<i64: 1, 64, 64>}, {transform_indices = @transform_2, window_bounds = array<i64: 1, 64, 128>}, {transform_indices = @transform_3, window_bounds = array<i64: 1, 64, 128>}, {transform_indices = @transform_4, window_bounds = array<i64: 1, 64, 128>}]} {
    %c0 = arith.constant 0 : index
    %c0_0 = arith.constant 0 : index
    %c0_1 = arith.constant 0 : index
    %0 = vector.load %arg4[%c0, %c0_0, %c0_1] : memref<1x64x128xbf16, #tpu.memory_space<vmem>>, vector<1x64x128xbf16>
    %1 = vector.shape_cast %0 : vector<1x64x128xbf16> to vector<64x128xbf16>
    %c0_2 = arith.constant 0 : index
    %c0_3 = arith.constant 0 : index
    %c0_4 = arith.constant 0 : index
    %2 = vector.load %arg2[%c0_2, %c0_3, %c0_4] : memref<1x64x64xbf16, #tpu.memory_space<vmem>>, vector<1x64x64xbf16>
    %3 = vector.shape_cast %2 : vector<1x64x64xbf16> to vector<64x64xbf16>
    %cst = arith.constant dense<0.000000e+00> : vector<64x128xf32>
    %4 = tpu.matmul %3, %1, %cst {dimension_numbers = #tpu.dot_dimension_numbers<[1], [0], [0], [1], [0, 0, 1, 1], [], []>} : vector<64x64xbf16>, vector<64x128xbf16>, vector<64x128xf32> -> vector<64x128xf32>
    %5 = arith.truncf %4 : vector<64x128xf32> to vector<64x128xbf16>
    %c0_5 = arith.constant 0 : index
    %c0_6 = arith.constant 0 : index
    %c0_7 = arith.constant 0 : index
    %6 = vector.load %arg5[%c0_5, %c0_6, %c0_7] : memref<1x64x128xbf16, #tpu.memory_space<vmem>>, vector<1x64x128xbf16>
    %7 = vector.shape_cast %6 : vector<1x64x128xbf16> to vector<64x128xbf16>
    %8 = vector.shape_cast %5 : vector<64x128xbf16> to vector<1x64x128xbf16>
    tpu.vector_store %arg5[%c0_5, %c0_6, %c0_7], %8 {strides = array<i32>} : memref<1x64x128xbf16, #tpu.memory_space<vmem>>, vector<1x64x128xbf16>,
    %c0_8 = arith.constant 0 : index
    %c0_9 = arith.constant 0 : index
    %c0_10 = arith.constant 0 : index
    %9 = vector.load %arg3[%c0_8, %c0_9, %c0_10] : memref<1x64x64xbf16, #tpu.memory_space<vmem>>, vector<1x64x64xbf16>
    %10 = vector.shape_cast %9 : vector<1x64x64xbf16> to vector<64x64xbf16>
    %cst_11 = arith.constant dense<0.000000e+00> : vector<64x128xf32>
    %11 = tpu.matmul %10, %1, %cst_11 {dimension_numbers = #tpu.dot_dimension_numbers<[1], [0], [0], [1], [0, 0, 1, 1], [], []>} : vector<64x64xbf16>, vector<64x128xbf16>, vector<64x128xf32> -> vector<64x128xf32>
    %12 = arith.truncf %11 : vector<64x128xf32> to vector<64x128xbf16>
    %c0_12 = arith.constant 0 : index
    %c0_13 = arith.constant 0 : index
    %c0_14 = arith.constant 0 : index
    %13 = vector.load %arg6[%c0_12, %c0_13, %c0_14] : memref<1x64x128xbf16, #tpu.memory_space<vmem>>, vector<1x64x128xbf16>
    %14 = vector.shape_cast %13 : vector<1x64x128xbf16> to vector<64x128xbf16>
    %15 = vector.shape_cast %12 : vector<64x128xbf16> to vector<1x64x128xbf16>
    tpu.vector_store %arg6[%c0_12, %c0_13, %c0_14], %15 {strides = array<i32>} : memref<1x64x128xbf16, #tpu.memory_space<vmem>>, vector<1x64x128xbf16>,
    return
  }
  func.func @transform_0(%arg0: i32, %arg1: i32) -> (i32, i32, i32) {
    %c0_i32 = arith.constant 0 : i32
    %c0_i32_0 = arith.constant 0 : i32
    return %arg0, %arg1, %c0_i32 : i32, i32, i32
  }
  func.func @transform_1(%arg0: i32, %arg1: i32) -> (i32, i32, i32) {
    %c0_i32 = arith.constant 0 : i32
    %c0_i32_0 = arith.constant 0 : i32
    return %arg0, %arg1, %c0_i32 : i32, i32, i32
  }
  func.func @transform_2(%arg0: i32, %arg1: i32) -> (i32, i32, i32) {
    %c0_i32 = arith.constant 0 : i32
    %c0_i32_0 = arith.constant 0 : i32
    %c0_i32_1 = arith.constant 0 : i32
    return %arg0, %c0_i32, %c0_i32_0 : i32, i32, i32
  }
  func.func @transform_3(%arg0: i32, %arg1: i32) -> (i32, i32, i32) {
    %c0_i32 = arith.constant 0 : i32
    %c0_i32_0 = arith.constant 0 : i32
    return %arg0, %arg1, %c0_i32 : i32, i32, i32
  }
  func.func @transform_4(%arg0: i32, %arg1: i32) -> (i32, i32, i32) {
    %c0_i32 = arith.constant 0 : i32
    %c0_i32_0 = arith.constant 0 : i32
    return %arg0, %arg1, %c0_i32 : i32, i32, i32
  }
}

</mosaic_0001>

<llo_original>
// kernel: tpu_custom_call.1
$region0: #{tpu_custom_call.1}
  #allocation0 [shape = 'u32[]', space=smem, size = 0x4, offset = 0x4, fixed_abs, tag = 'smem constant byte address 0x4 - core index']
  #allocation1 [shape = 'u32[144,128]{1,0:T(1,128)}', space=vmem, size = 0x12000, scoped, tag = 'internal scratch']
  %s0 = inlined_call_operand.hbm [shape: bf16[2,64,64], index: 0, kind: input, shape index: {}]
  %s1 = inlined_call_operand.hbm [shape: bf16[2,64,64], index: 1, kind: input, shape index: {}]
  %s2 = inlined_call_operand.hbm [shape: bf16[2,64,128], index: 2, kind: input, shape index: {}]
  %s3 = inlined_call_operand.hbm [shape: bf16[2,64,128], index: 3, kind: output, shape index: {0}]
  %s4 = inlined_call_operand.hbm [shape: bf16[2,64,128], index: 4, kind: output, shape index: {1}]
  %5 = xla_tuple %s3, %s4
  %s6 = sld [smem:[#allocation0]]
  $region65: #{tpu_custom_call.1} parent=0
    _
  %s8 = ssub.s32 1, %s6
  %s9 = scalar_select 0, %s8, %s6
  $region1: #{tpu_custom_call.1} parent=0
    #allocation2 [shape = 'u8[32768]{0}', space=vmem, size = 0x8000, scoped, tag = 'input window, operand 0']
    #allocation3 [shape = 's32[2]{0}', space=sflag, size = 0x8, scoped, tag = 'scoped memory for tpu_custom_call.1']
    #allocation4 [shape = 's32[2]{0}', space=sflag, size = 0x8, scoped, tag = 'scoped memory for tpu_custom_call.1']
    #allocation5 [shape = 'u8[32768]{0}', space=vmem, size = 0x8000, scoped, tag = 'input window, operand 1']
    #allocation6 [shape = 's32[2]{0}', space=sflag, size = 0x8, scoped, tag = 'scoped memory for tpu_custom_call.1']
    #allocation7 [shape = 'u8[32768]{0}', space=vmem, size = 0x8000, scoped, tag = 'input window, operand 2']
    #allocation8 [shape = 'u8[32768]{0}', space=vmem, size = 0x8000, scoped, tag = 'output window, operand 0']
    #allocation9 [shape = 'u8[32768]{0}', space=vmem, size = 0x8000, scoped, tag = 'output window, operand 1']
    #allocation10 [shape = 's32[2]{0}', space=sflag, size = 0x8, scoped, tag = 'scoped memory for tpu_custom_call.1']
    %10 = vsyncpa [#allocation3], 0
    %s11 = scalar_lea.sflag [#allocation3], 1
    %12 = vsyncpa %s11, 0
    %13 = vsyncpa [#allocation6], 0
    %s14 = scalar_lea.sflag [#allocation6], 1
    %15 = vsyncpa %s14, 0
    %16 = vsyncpa [#allocation4], 0
    %s17 = scalar_lea.sflag [#allocation4], 1
    %18 = vsyncpa %s17, 0
    %19 = vsyncpa [#allocation10], 0
    %s20 = scalar_lea.sflag [#allocation10], 1
    %21 = vsyncpa %s20, 0
    loop: start=0, step=1, limit=4
    $region2: #{tpu_custom_call.1} parent=1 // loop_pre_header
      _
    $region3: #{tpu_custom_call.1} parent=1 // loop_header
      %s23 = sphi 0, %s27
      %p24 = scmp.ge.s32.totalorder %s23, 4
      %s30 = sphi 0, %s42
      %s31 = sphi 0, %s38
      %s32 = sphi 0, %s30
      %s33 = sphi 0, %s31
      %s34 = sphi 0, %s32
      %s35 = sphi 0, %s33
      %s47 = sphi 0, %s49
      %s50 = sphi 0, %s47
      %s51 = sphi 0, %s50
      %s67 = sphi 0, %s51
      %s75 = sphi 0, %s77
      %s78 = sphi 0, %s75
      %s79 = sphi 0, %s78
      %s95 = sphi 0, %s79
      %s101 = sphi 0, %s103
      %s104 = sphi 0, %s101
      %s105 = sphi 0, %s104
      %s121 = sphi 0, %s105
      %s129 = sphi 0, %s131
      %s132 = sphi 0, %s129
      %s133 = sphi 0, %s132
      %s149 = sphi 0, %s133
      %s157 = sphi 0, %s159
      %s160 = sphi 0, %s157
      %s161 = sphi 0, %s160
      %s177 = sphi 0, %s161
    $region4: #{tpu_custom_call.1} parent=1 // loop_header_branch
      %26 = sbr.rel (%p24) target = $region8
    $region5: #{tpu_custom_call.1} parent=1 // loop_body
      %s28 = ssub.s32 %s23, 1
      %s29 = ssub.s32 %s23, 2
      %s36 = sadd.s32 1, %s31
      %p37 = scmp.ge.s32.totalorder %s36, 1
      %s38 = scalar_select %p37, 0, %s36
      %s39 = sadd.s32 1, %s30
      %s40 = scalar_select %p37, %s39, %s30
      %p41 = scmp.ge.s32.totalorder %s40, 2
      %s42 = scalar_select %p41, 0, %s40
      %s43 = ssub.s32 %s30, %s42
      %s44 = ssub.s32 %s31, %s38
      %s45 = sor.u32 %s43, %s44
      %p46 = scmp.eq.s32.totalorder %s45, 0
      %s48 = sadd.s32 %s47, 1
      %s49 = scalar_select %p46, %s47, %s48
      %p52 = pneg %p46
      %p53 = scmp.eq.s32.totalorder %s23, 1
      %p54 = por %p52, %p53
      %p55 = scmp.ne.s32.totalorder %s47, %s50
      %p56 = scmp.eq.s32.totalorder %s23, 0
      %p57 = por %p55, %p56
      %p58 = scmp.ne.s32.totalorder %s47, %s50
      %p59 = scmp.eq.s32.totalorder %s28, 1
      %p60 = por %p58, %p59
      %p61 = scmp.ne.s32.totalorder %s50, %s51
      %p62 = scmp.eq.s32.totalorder %s28, 0
      %p63 = por %p61, %p62
      %p64 = scmp.ne.s32.totalorder %s50, %s51
      %p65 = scmp.eq.s32.totalorder %s29, 1
      %p66 = por %p64, %p65
      %p68 = scmp.ne.s32.totalorder %s51, %s67
      %p69 = scmp.eq.s32.totalorder %s29, 0
      %p70 = por %p68, %p69
      %s71 = ssub.s32 %s30, %s42
      %s72 = ssub.s32 %s31, %s38
      %s73 = sor.u32 %s71, %s72
      %p74 = scmp.eq.s32.totalorder %s73, 0
      %s76 = sadd.s32 %s75, 1
      %s77 = scalar_select %p74, %s75, %s76
      %p80 = pneg %p74
      %p81 = scmp.eq.s32.totalorder %s23, 1
      %p82 = por %p80, %p81
      %p83 = scmp.ne.s32.totalorder %s75, %s78
      %p84 = scmp.eq.s32.totalorder %s23, 0
      %p85 = por %p83, %p84
      %p86 = scmp.ne.s32.totalorder %s75, %s78
      %p87 = scmp.eq.s32.totalorder %s28, 1
      %p88 = por %p86, %p87
      %p89 = scmp.ne.s32.totalorder %s78, %s79
      %p90 = scmp.eq.s32.totalorder %s28, 0
      %p91 = por %p89, %p90
      %p92 = scmp.ne.s32.totalorder %s78, %s79
      %p93 = scmp.eq.s32.totalorder %s29, 1
      %p94 = por %p92, %p93
      %p96 = scmp.ne.s32.totalorder %s79, %s95
      %p97 = scmp.eq.s32.totalorder %s29, 0
      %p98 = por %p96, %p97
      %s99 = ssub.s32 %s30, %s42
      %p100 = scmp.eq.s32.totalorder %s99, 0
      %s102 = sadd.s32 %s101, 1
      %s103 = scalar_select %p100, %s101, %s102
      %p106 = pneg %p100
      %p107 = scmp.eq.s32.totalorder %s23, 1
      %p108 = por %p106, %p107
      %p109 = scmp.ne.s32.totalorder %s101, %s104
      %p110 = scmp.eq.s32.totalorder %s23, 0
      %p111 = por %p109, %p110
      %p112 = scmp.ne.s32.totalorder %s101, %s104
      %p113 = scmp.eq.s32.totalorder %s28, 1
      %p114 = por %p112, %p113
      %p115 = scmp.ne.s32.totalorder %s104, %s105
      %p116 = scmp.eq.s32.totalorder %s28, 0
      %p117 = por %p115, %p116
      %p118 = scmp.ne.s32.totalorder %s104, %s105
      %p119 = scmp.eq.s32.totalorder %s29, 1
      %p120 = por %p118, %p119
      %p122 = scmp.ne.s32.totalorder %s105, %s121
      %p123 = scmp.eq.s32.totalorder %s29, 0
      %p124 = por %p122, %p123
      %s125 = ssub.s32 %s30, %s42
      %s126 = ssub.s32 %s31, %s38
      %s127 = sor.u32 %s125, %s126
      %p128 = scmp.eq.s32.totalorder %s127, 0
      %s130 = sadd.s32 %s129, 1
      %s131 = scalar_select %p128, %s129, %s130
      %p134 = pneg %p128
      %p135 = scmp.eq.s32.totalorder %s23, 1
      %p136 = por %p134, %p135
      %p137 = scmp.ne.s32.totalorder %s129, %s132
      %p138 = scmp.eq.s32.totalorder %s23, 0
      %p139 = por %p137, %p138
      %p140 = scmp.ne.s32.totalorder %s129, %s132
      %p141 = scmp.eq.s32.totalorder %s28, 1
      %p142 = por %p140, %p141
      %p143 = scmp.ne.s32.totalorder %s132, %s133
      %p144 = scmp.eq.s32.totalorder %s28, 0
      %p145 = por %p143, %p144
      %p146 = scmp.ne.s32.totalorder %s132, %s133
      %p147 = scmp.eq.s32.totalorder %s29, 1
      %p148 = por %p146, %p147
      %p150 = scmp.ne.s32.totalorder %s133, %s149
      %p151 = scmp.eq.s32.totalorder %s29, 0
      %p152 = por %p150, %p151
      %s153 = ssub.s32 %s30, %s42
      %s154 = ssub.s32 %s31, %s38
      %s155 = sor.u32 %s153, %s154
      %p156 = scmp.eq.s32.totalorder %s155, 0
      %s158 = sadd.s32 %s157, 1
      %s159 = scalar_select %p156, %s157, %s158
      %p162 = pneg %p156
      %p163 = scmp.eq.s32.totalorder %s23, 1
      %p164 = por %p162, %p163
      %p165 = scmp.ne.s32.totalorder %s157, %s160
      %p166 = scmp.eq.s32.totalorder %s23, 0
      %p167 = por %p165, %p166
      %p168 = scmp.ne.s32.totalorder %s157, %s160
      %p169 = scmp.eq.s32.totalorder %s28, 1
      %p170 = por %p168, %p169
      %p171 = scmp.ne.s32.totalorder %s160, %s161
      %p172 = scmp.eq.s32.totalorder %s28, 0
      %p173 = por %p171, %p172
      %p174 = scmp.ne.s32.totalorder %s160, %s161
      %p175 = scmp.eq.s32.totalorder %s29, 1
      %p176 = por %p174, %p175
      %p178 = scmp.ne.s32.totalorder %s161, %s177
      %p179 = scmp.eq.s32.totalorder %s29, 0
      %p180 = por %p178, %p179
      %p181 = scmp.le.s32.totalorder 1, %s23
      %p182 = scmp.lt.s32.totalorder %s23, 3
      %p183 = pnand %p181, %p182
      %p184 = pneg %p183
      // Predicated region
      $region9: #{tpu_custom_call.1} parent=5 // pred_check
        _
      $region10: #{tpu_custom_call.1} parent=5 // pred_check_branch
        %186 = sbr.rel (%p183) target = $region12
      $region11: #{tpu_custom_call.1} parent=5 // pred_region
        %s187 = ssub.s32 %s23, 1
      $region12: #{tpu_custom_call.1} parent=5 // pred_fallthru
        _
      %p188 = scmp.lt.s32.totalorder %s23, 2
      // Predicated region
      $region13: #{tpu_custom_call.1} parent=5 // pred_check
        %p189 = pneg %p188
      $region14: #{tpu_custom_call.1} parent=5 // pred_check_branch
        %191 = sbr.rel (%p189) target = $region16
      $region15: #{tpu_custom_call.1} parent=5 // pred_region
        // Predicated region
        $region17: #{tpu_custom_call.1} parent=15 // pred_check
          %p192 = pneg %p57
        $region18: #{tpu_custom_call.1} parent=15 // pred_check_branch
          %194 = sbr.rel (%p192) target = $region20
        $region19: #{tpu_custom_call.1} parent=15 // pred_region
          %s195 = sand.u32 %s47, 1
          %s196 = scalar_lea.sflag [#allocation3], %s195
          %s197 = sand.u32 %s47, 1
          %s198 = smul.addr %s197, 32
          %s199 = scalar_lea.vmem [#allocation2], %s198
          %s200 = smul.u32 8, %s31
          %s202 = ssub.s32 512, 512
          %203 = vsyncadd %s196, %s202
          %s204 = smul.addr %s30, 8
          %s205 = sadd.s32 %s200, %s204
          %s206 = smul.addr %s205, 64
          %s207 = scalar_lea.hbm %s0, %s206
          %s208 = sshll.u32 %s199, 4
          %s209 = int_to_ptr.vmem [resolvable:$true] %s208
          %214 = dma.hbm_to_vmem [thread:$0]  %s207, 512, %s209, %s196, 64, 64, 4
        $region20: #{tpu_custom_call.1} parent=15 // pred_fallthru
          _
        // Predicated region
        $region21: #{tpu_custom_call.1} parent=15 // pred_check
          %p215 = pneg %p85
        $region22: #{tpu_custom_call.1} parent=15 // pred_check_branch
          %217 = sbr.rel (%p215) target = $region24
        $region23: #{tpu_custom_call.1} parent=15 // pred_region
          %s218 = sand.u32 %s23, 1
          %s219 = scalar_lea.sflag [#allocation6], %s218
          %s220 = sand.u32 %s75, 1
          %s221 = smul.addr %s220, 32
          %s222 = scalar_lea.vmem [#allocation5], %s221
          %s223 = smul.u32 8, %s31
          %s225 = ssub.s32 512, 512
          %226 = vsyncadd %s219, %s225
          %s227 = smul.addr %s30, 8
          %s228 = sadd.s32 %s223, %s227
          %s229 = smul.addr %s228, 64
          %s230 = scalar_lea.hbm %s1, %s229
          %s231 = sshll.u32 %s222, 4
          %s232 = int_to_ptr.vmem [resolvable:$true] %s231
          %237 = dma.hbm_to_vmem [thread:$0]  %s230, 512, %s232, %s219, 64, 64, 4
        $region24: #{tpu_custom_call.1} parent=15 // pred_fallthru
          _
        // Predicated region
        $region25: #{tpu_custom_call.1} parent=15 // pred_check
          %p238 = pneg %p111
        $region26: #{tpu_custom_call.1} parent=15 // pred_check_branch
          %240 = sbr.rel (%p238) target = $region28
        $region27: #{tpu_custom_call.1} parent=15 // pred_region
          %s241 = sand.u32 %s23, 1
          %s242 = scalar_lea.sflag [#allocation6], %s241
          %s243 = sand.u32 %s101, 1
          %s244 = smul.addr %s243, 32
          %s245 = scalar_lea.vmem [#allocation7], %s244
          %s247 = ssub.s32 512, 512
          %248 = vsyncadd %s242, %s247
          %s249 = smul.addr %s30, 8
          %s250 = smul.addr %s249, 64
          %s251 = scalar_lea.hbm %s2, %s250
          %s252 = sshll.u32 %s245, 4
          %s253 = int_to_ptr.vmem [resolvable:$true] %s252
          %258 = dma.hbm_to_vmem [thread:$0]  %s251, 512, %s253, %s242, 64, 64, 4
        $region28: #{tpu_custom_call.1} parent=15 // pred_fallthru
          _
      $region16: #{tpu_custom_call.1} parent=5 // pred_fallthru
        _
      %p259 = scmp.le.s32.totalorder 1, %s23
      %p260 = scmp.lt.s32.totalorder %s23, 3
      %p261 = pnand %p259, %p260
      %p262 = pneg %p261
      // Predicated region
      $region29: #{tpu_custom_call.1} parent=5 // pred_check
        _
      $region30: #{tpu_custom_call.1} parent=5 // pred_check_branch
        %264 = sbr.rel (%p261) target = $region32
      $region31: #{tpu_custom_call.1} parent=5 // pred_region
        %s265 = ssub.s32 %s23, 1
        %s266 = sand.u32 %s50, 1
        %s267 = scalar_lea.sflag [#allocation3], %s266
        %s268 = sand.u32 %s50, 1
        %s269 = smul.addr %s268, 32
        %s270 = scalar_lea.vmem [#allocation2], %s269
        // Predicated region
        $region33: #{tpu_custom_call.1} parent=31 // pred_check
          %p271 = pneg %p63
        $region34: #{tpu_custom_call.1} parent=31 // pred_check_branch
          %273 = sbr.rel (%p271) target = $region36
        $region35: #{tpu_custom_call.1} parent=31 // pred_region
          %274 = dma.done %s267, 512
        $region36: #{tpu_custom_call.1} parent=31 // pred_fallthru
          _
        %s275 = sand.u32 %s28, 1
        %s276 = scalar_lea.sflag [#allocation6], %s275
        %s277 = sand.u32 %s78, 1
        %s278 = smul.addr %s277, 32
        %s279 = scalar_lea.vmem [#allocation5], %s278
        // Predicated region
        $region37: #{tpu_custom_call.1} parent=31 // pred_check
          %p280 = pneg %p91
        $region38: #{tpu_custom_call.1} parent=31 // pred_check_branch
          %282 = sbr.rel (%p280) target = $region40
        $region39: #{tpu_custom_call.1} parent=31 // pred_region
          %283 = dma.done %s276, 512
        $region40: #{tpu_custom_call.1} parent=31 // pred_fallthru
          _
        %s284 = sand.u32 %s28, 1
        %s285 = scalar_lea.sflag [#allocation6], %s284
        %s286 = sand.u32 %s104, 1
        %s287 = smul.addr %s286, 32
        %s288 = scalar_lea.vmem [#allocation7], %s287
        // Predicated region
        $region41: #{tpu_custom_call.1} parent=31 // pred_check
          %p289 = pneg %p117
        $region42: #{tpu_custom_call.1} parent=31 // pred_check_branch
          %291 = sbr.rel (%p289) target = $region44
        $region43: #{tpu_custom_call.1} parent=31 // pred_region
          %292 = dma.done %s285, 512
        $region44: #{tpu_custom_call.1} parent=31 // pred_fallthru
          _
        %s293 = sand.u32 %s50, 1
        %s294 = scalar_lea.sflag [#allocation3], %s293
        %s295 = sand.u32 %s50, 1
        %s296 = smul.addr %s295, 32
        %s297 = scalar_lea.vmem [#allocation2], %s296
        %p298 = pneg %p63
        %p299 = pneg %p60
        %s300 = sand.u32 %s28, 1
        %s301 = scalar_lea.sflag [#allocation6], %s300
        %s302 = sand.u32 %s78, 1
        %s303 = smul.addr %s302, 32
        %s304 = scalar_lea.vmem [#allocation5], %s303
        %p305 = pneg %p91
        %p306 = pneg %p88
        %s307 = sand.u32 %s28, 1
        %s308 = scalar_lea.sflag [#allocation6], %s307
        %s309 = sand.u32 %s104, 1
        %s310 = smul.addr %s309, 32
        %s311 = scalar_lea.vmem [#allocation7], %s310
        %p312 = pneg %p117
        %p313 = pneg %p114
        %p314 = pneg %p145
        %p315 = pneg %p142
        %s316 = sand.u32 %s132, 1
        %s317 = scalar_lea.sflag [#allocation4], %s316
        %s318 = sand.u32 %s132, 1
        %s319 = smul.addr %s318, 32
        %s320 = scalar_lea.vmem [#allocation8], %s319
        %p321 = pneg %p173
        %p322 = pneg %p170
        %s323 = sand.u32 %s160, 1
        %s324 = scalar_lea.sflag [#allocation10], %s323
        %s325 = sand.u32 %s160, 1
        %s326 = smul.addr %s325, 32
        %s327 = scalar_lea.vmem [#allocation9], %s326
        %s328 = smul.u32 8, %s33
        %s329 = smul.u32 8, %s33
        %s330 = smul.u32 8, %s33
        %s331 = smul.u32 8, %s33
        %v333 = vld [vmem:[%s288] sm:$0xf]
        %v334 = vld [vmem:[%s288 + $0x4] sm:$0xf]
        %v335 = vld [vmem:[%s288 + $0x8] sm:$0xf]
        %v336 = vld [vmem:[%s288 + $0xc] sm:$0xf]
        %v337 = vld [vmem:[%s288 + $0x10] sm:$0xf]
        %v338 = vld [vmem:[%s288 + $0x14] sm:$0xf]
        %v339 = vld [vmem:[%s288 + $0x18] sm:$0xf]
        %v340 = vld [vmem:[%s288 + $0x1c] sm:$0xf]
        %v341 = vld [vmem:[%s270] sm:$0xf]
        %v342 = vld [vmem:[%s270 + $0x4] sm:$0xf]
        %v343 = vld [vmem:[%s270 + $0x8] sm:$0xf]
        %v344 = vld [vmem:[%s270 + $0xc] sm:$0xf]
        %v345 = vld [vmem:[%s270 + $0x10] sm:$0xf]
        %v346 = vld [vmem:[%s270 + $0x14] sm:$0xf]
        %v347 = vld [vmem:[%s270 + $0x18] sm:$0xf]
        %v348 = vld [vmem:[%s270 + $0x1c] sm:$0xf]
        %v357 = vunpack.c.l.b16 %v341
        %v358 = vunpack.c.l.b16 %v342
        %v359 = vunpack.c.l.b16 %v343
        %v360 = vunpack.c.l.b16 %v344
        %v361 = vunpack.c.l.b16 %v345
        %v362 = vunpack.c.l.b16 %v346
        %v363 = vunpack.c.l.b16 %v347
        %v364 = vunpack.c.l.b16 %v348
        %v365 = vpack.c.b16 %v358, %v357
        %v366 = vpack.c.b16 %v360, %v359
        %v367 = vpack.c.b16 %v362, %v361
        %v368 = vpack.c.b16 %v364, %v363
        %v377 = vunpack.c.l.b16 %v333
        %v378 = vunpack.c.l.b16 %v334
        %v379 = vunpack.c.l.b16 %v335
        %v380 = vunpack.c.l.b16 %v336
        %v381 = vunpack.c.l.b16 %v337
        %v382 = vunpack.c.l.b16 %v338
        %v383 = vunpack.c.l.b16 %v339
        %v384 = vunpack.c.l.b16 %v340
        %v385 = vpack.c.b16 %v378, %v377
        %v386 = vpack.c.b16 %v380, %v379
        %v387 = vpack.c.b16 %v382, %v381
        %v388 = vpack.c.b16 %v384, %v383
        %vm393 = vcmask 523264
        %v395 = vsel %vm393, %v365, 0
        %v398 = vsel %vm393, %v366, 0
        %v401 = vsel %vm393, %v367, 0
        %v404 = vsel %vm393, %v368, 0
        %406 = vmatprep.subr.bf16.mxu0 0
        %407 = vmatpush1.bf16.msra.mxu0 %v385
        %408 = vmatprep.subr.bf16.mxu0 0
        %409 = vmatpush1.bf16.msra.mxu0 %v386
        %410 = vmatprep.subr.bf16.mxu0 0
        %411 = vmatpush1.bf16.msra.mxu0 %v387
        %412 = vmatprep.subr.bf16.mxu0 0
        %413 = vmatpush1.bf16.msra.mxu0 %v388
        %414 = vmatprep.subr.bf16.mxu0 0
        %415 = vmatpush1.bf16.msra.mxu0 0
        %416 = vmatprep.subr.bf16.mxu0 0
        %417 = vmatpush1.bf16.msra.mxu0 0
        %418 = vmatprep.subr.bf16.mxu0 0
        %419 = vmatpush1.bf16.msra.mxu0 0
        %420 = vmatprep.subr.bf16.mxu0 0
        %421 = vmatpush1.bf16.msra.mxu0 0
        %422 = vmatprep.subr.bf16.mxu0 0
        %423 = vmatpush1.bf16.msra.mxu0 0
        %424 = vmatprep.subr.bf16.mxu0 0
        %425 = vmatpush1.bf16.msra.mxu0 0
        %426 = vmatprep.subr.bf16.mxu0 0
        %427 = vmatpush1.bf16.msra.mxu0 0
        %428 = vmatprep.subr.bf16.mxu0 0
        %429 = vmatpush1.bf16.msra.mxu0 0
        %430 = vmatprep.subr.bf16.mxu0 0
        %431 = vmatpush1.bf16.msra.mxu0 0
        %432 = vmatprep.subr.bf16.mxu0 0
        %433 = vmatpush1.bf16.msra.mxu0 0
        %434 = vmatprep.subr.bf16.mxu0 0
        %435 = vmatpush1.bf16.msra.mxu0 0
        %436 = vmatprep.subr.bf16.mxu0 0
        %437 = vmatpush1.bf16.msra.mxu0 0
        %438 = vmatprep.mubr.bf16.mxu0 0
        %439 = vmatmul.mubr.bf16.gmra.mrb[0].mxu0 %v395
        %v440 = vpop.f32.mrb[0].mxu0
        %v441 = vadd.f32 0.0, %v440
        %v442 = vpop.f32.mrb[0].mxu0
        %v443 = vpop.f32.mrb[0].mxu0
        %v444 = vadd.f32 0.0, %v443
        %v445 = vpop.f32.mrb[0].mxu0
        %446 = vmatprep.mubr.bf16.mxu0 0
        %447 = vmatmul.mubr.bf16.gmra.mrb[0].mxu0 %v398
        %v448 = vpop.f32.mrb[0].mxu0
        %v449 = vadd.f32 0.0, %v448
        %v450 = vpop.f32.mrb[0].mxu0
        %v451 = vpop.f32.mrb[0].mxu0
        %v452 = vadd.f32 0.0, %v451
        %v453 = vpop.f32.mrb[0].mxu0
        %454 = vmatprep.mubr.bf16.mxu0 0
        %455 = vmatmul.mubr.bf16.gmra.mrb[0].mxu0 %v401
        %v456 = vpop.f32.mrb[0].mxu0
        %v457 = vadd.f32 0.0, %v456
        %v458 = vpop.f32.mrb[0].mxu0
        %v459 = vpop.f32.mrb[0].mxu0
        %v460 = vadd.f32 0.0, %v459
        %v461 = vpop.f32.mrb[0].mxu0
        %462 = vmatprep.mubr.bf16.mxu0 0
        %463 = vmatmul.mubr.bf16.gmra.mrb[0].mxu0 %v404
        %v464 = vpop.f32.mrb[0].mxu0
        %v465 = vadd.f32 0.0, %v464
        %v466 = vpop.f32.mrb[0].mxu0
        %v467 = vpop.f32.mrb[0].mxu0
        %v468 = vadd.f32 0.0, %v467
        %v469 = vpop.f32.mrb[0].mxu0
        %470 = vdwg.mxu0
        %v471 = vpack.c.bf16 %v444, %v441
        %v472 = vpack.c.bf16 %v452, %v449
        %v473 = vpack.c.bf16 %v460, %v457
        %v474 = vpack.c.bf16 %v468, %v465
        %v479 = vunpack.c.l.b16 %v471
        %v480 = vunpack.c.h.b16 %v471
        %v481 = vunpack.c.l.b16 %v472
        %v482 = vunpack.c.h.b16 %v472
        %v483 = vunpack.c.l.b16 %v473
        %v484 = vunpack.c.h.b16 %v473
        %v485 = vunpack.c.l.b16 %v474
        %v486 = vunpack.c.h.b16 %v474
        %v487 = vpack.c.b16 %v479, %v479
        %v488 = vpack.c.b16 %v480, %v480
        %v489 = vpack.c.b16 %v481, %v481
        %v490 = vpack.c.b16 %v482, %v482
        %v491 = vpack.c.b16 %v483, %v483
        %v492 = vpack.c.b16 %v484, %v484
        %v493 = vpack.c.b16 %v485, %v485
        %v494 = vpack.c.b16 %v486, %v486
        %503 = vst [vmem:[%s320] sm:$0xf] %v487
        %504 = vst [vmem:[%s320 + $0x4] sm:$0xf] %v488
        %505 = vst [vmem:[%s320 + $0x8] sm:$0xf] %v489
        %506 = vst [vmem:[%s320 + $0xc] sm:$0xf] %v490
        %507 = vst [vmem:[%s320 + $0x10] sm:$0xf] %v491
        %508 = vst [vmem:[%s320 + $0x14] sm:$0xf] %v492
        %509 = vst [vmem:[%s320 + $0x18] sm:$0xf] %v493
        %510 = vst [vmem:[%s320 + $0x1c] sm:$0xf] %v494
        %v511 = vld [vmem:[%s279] sm:$0xf]
        %v512 = vld [vmem:[%s279 + $0x4] sm:$0xf]
        %v513 = vld [vmem:[%s279 + $0x8] sm:$0xf]
        %v514 = vld [vmem:[%s279 + $0xc] sm:$0xf]
        %v515 = vld [vmem:[%s279 + $0x10] sm:$0xf]
        %v516 = vld [vmem:[%s279 + $0x14] sm:$0xf]
        %v517 = vld [vmem:[%s279 + $0x18] sm:$0xf]
        %v518 = vld [vmem:[%s279 + $0x1c] sm:$0xf]
        %v527 = vunpack.c.l.b16 %v511
        %v528 = vunpack.c.l.b16 %v512
        %v529 = vunpack.c.l.b16 %v513
        %v530 = vunpack.c.l.b16 %v514
        %v531 = vunpack.c.l.b16 %v515
        %v532 = vunpack.c.l.b16 %v516
        %v533 = vunpack.c.l.b16 %v517
        %v534 = vunpack.c.l.b16 %v518
        %v535 = vpack.c.b16 %v528, %v527
        %v536 = vpack.c.b16 %v530, %v529
        %v537 = vpack.c.b16 %v532, %v531
        %v538 = vpack.c.b16 %v534, %v533
        %v540 = vsel %vm393, %v535, 0
        %v543 = vsel %vm393, %v536, 0
        %v546 = vsel %vm393, %v537, 0
        %v549 = vsel %vm393, %v538, 0
        %551 = vmatprep.subr.bf16.mxu0 0
        %552 = vmatpush1.bf16.msra.mxu0 %v385
        %553 = vmatprep.subr.bf16.mxu0 0
        %554 = vmatpush1.bf16.msra.mxu0 %v386
        %555 = vmatprep.subr.bf16.mxu0 0
        %556 = vmatpush1.bf16.msra.mxu0 %v387
        %557 = vmatprep.subr.bf16.mxu0 0
        %558 = vmatpush1.bf16.msra.mxu0 %v388
        %559 = vmatprep.subr.bf16.mxu0 0
        %560 = vmatpush1.bf16.msra.mxu0 0
        %561 = vmatprep.subr.bf16.mxu0 0
        %562 = vmatpush1.bf16.msra.mxu0 0
        %563 = vmatprep.subr.bf16.mxu0 0
        %564 = vmatpush1.bf16.msra.mxu0 0
        %565 = vmatprep.subr.bf16.mxu0 0
        %566 = vmatpush1.bf16.msra.mxu0 0
        %567 = vmatprep.subr.bf16.mxu0 0
        %568 = vmatpush1.bf16.msra.mxu0 0
        %569 = vmatprep.subr.bf16.mxu0 0
        %570 = vmatpush1.bf16.msra.mxu0 0
        %571 = vmatprep.subr.bf16.mxu0 0
        %572 = vmatpush1.bf16.msra.mxu0 0
        %573 = vmatprep.subr.bf16.mxu0 0
        %574 = vmatpush1.bf16.msra.mxu0 0
        %575 = vmatprep.subr.bf16.mxu0 0
        %576 = vmatpush1.bf16.msra.mxu0 0
        %577 = vmatprep.subr.bf16.mxu0 0
        %578 = vmatpush1.bf16.msra.mxu0 0
        %579 = vmatprep.subr.bf16.mxu0 0
        %580 = vmatpush1.bf16.msra.mxu0 0
        %581 = vmatprep.subr.bf16.mxu0 0
        %582 = vmatpush1.bf16.msra.mxu0 0
        %583 = vmatprep.mubr.bf16.mxu0 0
        %584 = vmatmul.mubr.bf16.gmra.mrb[0].mxu0 %v540
        %v585 = vpop.f32.mrb[0].mxu0
        %v586 = vadd.f32 0.0, %v585
        %v587 = vpop.f32.mrb[0].mxu0
        %v588 = vpop.f32.mrb[0].mxu0
        %v589 = vadd.f32 0.0, %v588
        %v590 = vpop.f32.mrb[0].mxu0
        %591 = vmatprep.mubr.bf16.mxu0 0
        %592 = vmatmul.mubr.bf16.gmra.mrb[0].mxu0 %v543
        %v593 = vpop.f32.mrb[0].mxu0
        %v594 = vadd.f32 0.0, %v593
        %v595 = vpop.f32.mrb[0].mxu0
        %v596 = vpop.f32.mrb[0].mxu0
        %v597 = vadd.f32 0.0, %v596
        %v598 = vpop.f32.mrb[0].mxu0
        %599 = vmatprep.mubr.bf16.mxu0 0
        %600 = vmatmul.mubr.bf16.gmra.mrb[0].mxu0 %v546
        %v601 = vpop.f32.mrb[0].mxu0
        %v602 = vadd.f32 0.0, %v601
        %v603 = vpop.f32.mrb[0].mxu0
        %v604 = vpop.f32.mrb[0].mxu0
        %v605 = vadd.f32 0.0, %v604
        %v606 = vpop.f32.mrb[0].mxu0
        %607 = vmatprep.mubr.bf16.mxu0 0
        %608 = vmatmul.mubr.bf16.gmra.mrb[0].mxu0 %v549
        %v609 = vpop.f32.mrb[0].mxu0
        %v610 = vadd.f32 0.0, %v609
        %v611 = vpop.f32.mrb[0].mxu0
        %v612 = vpop.f32.mrb[0].mxu0
        %v613 = vadd.f32 0.0, %v612
        %v614 = vpop.f32.mrb[0].mxu0
        %615 = vdwg.mxu0
        %v616 = vpack.c.bf16 %v589, %v586
        %v617 = vpack.c.bf16 %v597, %v594
        %v618 = vpack.c.bf16 %v605, %v602
        %v619 = vpack.c.bf16 %v613, %v610
        %v624 = vunpack.c.l.b16 %v616
        %v625 = vunpack.c.h.b16 %v616
        %v626 = vunpack.c.l.b16 %v617
        %v627 = vunpack.c.h.b16 %v617
        %v628 = vunpack.c.l.b16 %v618
        %v629 = vunpack.c.h.b16 %v618
        %v630 = vunpack.c.l.b16 %v619
        %v631 = vunpack.c.h.b16 %v619
        %v632 = vpack.c.b16 %v624, %v624
        %v633 = vpack.c.b16 %v625, %v625
        %v634 = vpack.c.b16 %v626, %v626
        %v635 = vpack.c.b16 %v627, %v627
        %v636 = vpack.c.b16 %v628, %v628
        %v637 = vpack.c.b16 %v629, %v629
        %v638 = vpack.c.b16 %v630, %v630
        %v639 = vpack.c.b16 %v631, %v631
        %648 = vst [vmem:[%s327] sm:$0xf] %v632
        %649 = vst [vmem:[%s327 + $0x4] sm:$0xf] %v633
        %650 = vst [vmem:[%s327 + $0x8] sm:$0xf] %v634
        %651 = vst [vmem:[%s327 + $0xc] sm:$0xf] %v635
        %652 = vst [vmem:[%s327 + $0x10] sm:$0xf] %v636
        %653 = vst [vmem:[%s327 + $0x14] sm:$0xf] %v637
        %654 = vst [vmem:[%s327 + $0x18] sm:$0xf] %v638
        %655 = vst [vmem:[%s327 + $0x1c] sm:$0xf] %v639
        %s656 = sand.u32 %s132, 1
        %s657 = scalar_lea.sflag [#allocation4], %s656
        %s658 = sand.u32 %s132, 1
        %s659 = smul.addr %s658, 32
        %s660 = scalar_lea.vmem [#allocation8], %s659
        %s661 = sand.u32 %s160, 1
        %s662 = scalar_lea.sflag [#allocation10], %s661
        %s663 = sand.u32 %s160, 1
        %s664 = smul.addr %s663, 32
        %s665 = scalar_lea.vmem [#allocation9], %s664
        // Predicated region
        $region45: #{tpu_custom_call.1} parent=31 // pred_check
          %p666 = pneg %p142
        $region46: #{tpu_custom_call.1} parent=31 // pred_check_branch
          %668 = sbr.rel (%p666) target = $region48
        $region47: #{tpu_custom_call.1} parent=31 // pred_region
          %s669 = smul.u32 8, %s33
          %s671 = ssub.s32 512, 512
          %672 = vsyncadd %s657, %s671
          %s673 = smul.addr %s32, 8
          %s674 = sadd.s32 %s669, %s673
          %s675 = smul.addr %s674, 64
          %s676 = scalar_lea.hbm %s3, %s675
          %s677 = sshll.u32 %s660, 4
          %s678 = int_to_ptr.vmem [resolvable:$true] %s677
          %683 = dma.vmem_to_hbm [thread:$0]  %s678, 512, %s676, %s657, 64, 64, 4
        $region48: #{tpu_custom_call.1} parent=31 // pred_fallthru
          _
        // Predicated region
        $region49: #{tpu_custom_call.1} parent=31 // pred_check
          %p684 = pneg %p170
        $region50: #{tpu_custom_call.1} parent=31 // pred_check_branch
          %686 = sbr.rel (%p684) target = $region52
        $region51: #{tpu_custom_call.1} parent=31 // pred_region
          %s687 = smul.u32 8, %s33
          %s689 = ssub.s32 512, 512
          %690 = vsyncadd %s662, %s689
          %s691 = smul.addr %s32, 8
          %s692 = sadd.s32 %s687, %s691
          %s693 = smul.addr %s692, 64
          %s694 = scalar_lea.hbm %s4, %s693
          %s695 = sshll.u32 %s665, 4
          %s696 = int_to_ptr.vmem [resolvable:$true] %s695
          %701 = dma.vmem_to_hbm [thread:$0]  %s696, 512, %s694, %s662, 64, 64, 4
        $region52: #{tpu_custom_call.1} parent=31 // pred_fallthru
          _
      $region32: #{tpu_custom_call.1} parent=5 // pred_fallthru
        _
      %p702 = scmp.le.s32.totalorder 2, %s23
      // Predicated region
      $region53: #{tpu_custom_call.1} parent=5 // pred_check
        %p703 = pneg %p702
      $region54: #{tpu_custom_call.1} parent=5 // pred_check_branch
        %705 = sbr.rel (%p703) target = $region56
      $region55: #{tpu_custom_call.1} parent=5 // pred_region
        %s706 = ssub.s32 %s23, 2
        // Predicated region
        $region57: #{tpu_custom_call.1} parent=55 // pred_check
          %p707 = pneg %p148
        $region58: #{tpu_custom_call.1} parent=55 // pred_check_branch
          %709 = sbr.rel (%p707) target = $region60
        $region59: #{tpu_custom_call.1} parent=55 // pred_region
          %s710 = sand.u32 %s133, 1
          %s711 = scalar_lea.sflag [#allocation4], %s710
          %s712 = sand.u32 %s133, 1
          %s713 = smul.addr %s712, 32
          %s714 = scalar_lea.vmem [#allocation8], %s713
          %715 = dma.done %s711, 512
        $region60: #{tpu_custom_call.1} parent=55 // pred_fallthru
          _
        // Predicated region
        $region61: #{tpu_custom_call.1} parent=55 // pred_check
          %p716 = pneg %p176
        $region62: #{tpu_custom_call.1} parent=55 // pred_check_branch
          %718 = sbr.rel (%p716) target = $region64
        $region63: #{tpu_custom_call.1} parent=55 // pred_region
          %s719 = sand.u32 %s161, 1
          %s720 = scalar_lea.sflag [#allocation10], %s719
          %s721 = sand.u32 %s161, 1
          %s722 = smul.addr %s721, 32
          %s723 = scalar_lea.vmem [#allocation9], %s722
          %724 = dma.done %s720, 512
        $region64: #{tpu_custom_call.1} parent=55 // pred_fallthru
          _
      $region56: #{tpu_custom_call.1} parent=5 // pred_fallthru
        _
    $region6: #{tpu_custom_call.1} parent=1 // loop_footer
      %s27 = sadd.s32 1, %s23
    $region7: #{tpu_custom_call.1} parent=1 // loop_footer_branch
      %22 = sbr.rel target = $region3
    $region8: #{tpu_custom_call.1} parent=1 // loop_exit
      _
    %725 = vsyncpa [#allocation3], 1
    %s726 = scalar_lea.sflag [#allocation3], 1
    %727 = vsyncpa %s726, 1
    %728 = vsyncpa [#allocation6], 1
    %s729 = scalar_lea.sflag [#allocation6], 1
    %730 = vsyncpa %s729, 1
    %731 = vsyncpa [#allocation4], 1
    %s732 = scalar_lea.sflag [#allocation4], 1
    %733 = vsyncpa %s732, 1
    %734 = vsyncpa [#allocation10], 1
    %s735 = scalar_lea.sflag [#allocation10], 1
    %736 = vsyncpa %s735, 1

</llo_original>
